<compile_context>
chip_gen: v7x
topology: tpu7x:2x2x1
jax: 0.10.0
libtpu: 0.0.40
codegen_flags: <defaults>
</compile_context>

<pallas_src>
import math
from typing import NamedTuple

import jax
import jax.numpy as jnp
from jax.experimental import pallas as pl
from jax.experimental.pallas import tpu as pltpu

_HIDDEN1 = 128
_HIDDEN2 = 64
_LANE = 128
_NEG_BIG = -1e30        # bias for padded action columns -> exp() underflows to 0


def _round_up(x, m):
    return ((x + m - 1) // m) * m


def _policy_kernel(x_ref, w1_ref, b1_ref, w2_ref, b2_ref, w3_ref, b3_ref,
                   probs_ref):
    # Linear(obs_features, 128) + ReLU  (bf16 operands on the MXU, f32 accumulate)
    h1 = jnp.dot(x_ref[...], w1_ref[...], preferred_element_type=jnp.float32)
    h1 = jnp.maximum(h1 + b1_ref[...], 0.0)                      # (TB, 128) f32

    # Linear(128, 64) + ReLU
    h2 = jnp.dot(h1.astype(jnp.bfloat16), w2_ref[...],
                 preferred_element_type=jnp.float32)
    h2 = jnp.maximum(h2 + b2_ref[...], 0.0)                      # (TB, 64) f32

    # CategoricalPolicy: Linear(64, A_pad) -> softmax.  Padded action columns
    # carry a -1e30 bias, so exp(logit - max) == 0 there and the softmax over
    # the real actions is unchanged.
    logits = jnp.dot(h2.astype(jnp.bfloat16), w3_ref[...],
                     preferred_element_type=jnp.float32)
    logits = logits + b3_ref[...]                                # (TB, A_pad) f32

    m = jnp.max(logits, axis=-1, keepdims=True)
    e = jnp.exp(logits - m)
    # Exact division (NOT approx reciprocal): these probs feed categorical
    # sampling / REINFORCE log-probs, so rows must sum to 1 to f32 precision.
    probs = e / jnp.sum(e, axis=-1, keepdims=True)
    probs_ref[...] = probs.astype(probs_ref.dtype)               # lane-dense bf16 store


class PreparedParams(NamedTuple):
    w1: jax.Array
    b1: jax.Array
    w2: jax.Array
    b2: jax.Array
    w3: jax.Array
    b3: jax.Array
    obs_features: int
    num_actions: int
    f_pad: int
    a_pad: int


def prepare_params(params):
    """One-time pad + dtype conversion of policy-net params (hoisted out of the
    per-step forward so rollout loops pay zero per-call layout cost)."""
    w1, b1, w2, b2, w3, b3 = params
    F = w1.shape[0]
    A = w3.shape[1]
    f_pad = _round_up(max(F, 8), 8)             # >= one sublane
    a_pad = _round_up(max(A, _LANE), _LANE)     # lane-dense output slab

    w1_p = jnp.zeros((f_pad, _HIDDEN1), jnp.bfloat16).at[:F, :].set(
        w1.astype(jnp.bfloat16))
    b1_p = jnp.asarray(b1, jnp.float32).reshape(1, _HIDDEN1)
    w2_p = jnp.asarray(w2, jnp.bfloat16)
    b2_p = jnp.asarray(b2, jnp.float32).reshape(1, _HIDDEN2)
    w3_p = jnp.zeros((_HIDDEN2, a_pad), jnp.bfloat16).at[:, :A].set(
        w3.astype(jnp.bfloat16))
    b3_p = jnp.full((1, a_pad), _NEG_BIG, jnp.float32).at[:, :A].set(
        jnp.asarray(b3, jnp.float32).reshape(1, A))
    return PreparedParams(w1_p, b1_p, w2_p, b2_p, w3_p, b3_p, F, A, f_pad, a_pad)


def cartpole_reinforce_forward(obs, prepared: PreparedParams, *, tile_b=1024):
    """Fused policy-net forward. obs: (B, obs_features) f32 (or bf16).

    Returns categorical action probabilities of shape (B, num_actions) f32.
    """
    B, F = obs.shape
    assert F == prepared.obs_features, "obs feature dim mismatch with prepared params"
    f_pad, a_pad, A = prepared.f_pad, prepared.a_pad, prepared.num_actions

    # Batch tile: multiple of 16 (bf16 sublane packing -> unmasked stores, clean
    # (8,128) tiling) and as large as requested (default 1024) to amortize the
    # ~0.35us per-grid-step overhead.  Large batches naturally give grid >= 2,
    # which ("parallel",) shards across v7x's two TensorCores.
    TB = _round_up(min(tile_b, max(B, 1)), 16)
    B_pad = _round_up(B, TB)
    grid = (B_pad // TB,)

    # Only the observation tensor is laid out per call (it changes every step).
    x_p = jnp.zeros((B_pad, f_pad), jnp.bfloat16).at[:B, :F].set(
        obs.astype(jnp.bfloat16))

    flops = 2 * B_pad * (f_pad * _HIDDEN1 + _HIDDEN1 * _HIDDEN2 + _HIDDEN2 * a_pad)
    transcendentals = B_pad * a_pad                       # exp per (padded) logit
    bytes_accessed = (
        x_p.size * 2 + B_pad * a_pad * 2                  # bf16 in / bf16 out
        + (prepared.w1.size + prepared.w2.size + prepared.w3.size) * 2
        + (prepared.b1.size + prepared.b2.size + prepared.b3.size) * 4)

    out = pl.pallas_call(
        _policy_kernel,
        out_shape=jax.ShapeDtypeStruct((B_pad, a_pad), jnp.bfloat16),
        grid=grid,
        in_specs=[
            pl.BlockSpec((TB, f_pad), lambda i: (i, 0)),          # x: batch-tiled
            pl.BlockSpec((f_pad, _HIDDEN1), lambda i: (0, 0)),    # weights/biases:
            pl.BlockSpec((1, _HIDDEN1), lambda i: (0, 0)),        #  constant index_map
            pl.BlockSpec((_HIDDEN1, _HIDDEN2), lambda i: (0, 0)), #  -> VMEM-resident
            pl.BlockSpec((1, _HIDDEN2), lambda i: (0, 0)),
            pl.BlockSpec((_HIDDEN2, a_pad), lambda i: (0, 0)),
            pl.BlockSpec((1, a_pad), lambda i: (0, 0)),
        ],
        out_specs=pl.BlockSpec((TB, a_pad), lambda i: (i, 0)),    # lane-dense out
        compiler_params=pltpu.CompilerParams(
            dimension_semantics=("parallel",),
            vmem_limit_bytes=32 * 1024 * 1024),
        cost_estimate=pl.CostEstimate(
            flops=flops, transcendentals=transcendentals,
            bytes_accessed=bytes_accessed),
    )(x_p, prepared.w1, prepared.b1, prepared.w2, prepared.b2,
      prepared.w3, prepared.b3)

    return out[:B, :A].astype(jnp.float32)


def init_params(key, obs_features, num_actions):
    """Deterministic init mimicking PyTorch nn.Linear default (U[-k,k], k=1/sqrt(fan_in))."""
    def linear(key, fan_in, fan_out):
        kw, kb = jax.random.split(key)
        bound = 1.0 / math.sqrt(fan_in)
        w = jax.random.uniform(kw, (fan_in, fan_out), jnp.float32, -bound, bound)
        b = jax.random.uniform(kb, (1, fan_out), jnp.float32, -bound, bound)
        return w, b

    k1, k2, k3 = jax.random.split(key, 3)
    w1, b1 = linear(k1, obs_features, _HIDDEN1)
    w2, b2 = linear(k2, _HIDDEN1, _HIDDEN2)
    w3, b3 = linear(k3, _HIDDEN2, num_actions)
    return (w1, b1, w2, b2, w3, b3)


def _bf16(x):
    return x.astype(jnp.bfloat16).astype(jnp.float32)


def reference_forward_bf16(x, params):
    """Pure-JAX reference matching the kernel's bf16-operand/f32-accumulate numerics."""
    w1, b1, w2, b2, w3, b3 = params
    h1 = jnp.maximum(_bf16(x) @ _bf16(w1) + b1, 0.0)
    h2 = jnp.maximum(_bf16(h1) @ _bf16(w2) + b2, 0.0)
    logits = _bf16(h2) @ _bf16(w3) + b3
    return jax.nn.softmax(logits, axis=-1)


def reference_forward_f32(x, params):
    w1, b1, w2, b2, w3, b3 = params
    h1 = jnp.maximum(x @ w1 + b1, 0.0)
    h2 = jnp.maximum(h1 @ w2 + b2, 0.0)
    return jax.nn.softmax(h2 @ w3 + b3, axis=-1)


if __name__ == "__main__":
    # CartPole-v1: obs_features=4, num_actions=2.
    B, OBS_FEATURES, NUM_ACTIONS = 8, 4, 2

    key = jax.random.PRNGKey(0)
    k_params, k_obs = jax.random.split(key)
    params = init_params(k_params, OBS_FEATURES, NUM_ACTIONS)
    prepared = prepare_params(params)          # one-time pad + bf16 cast
    obs = jax.random.normal(k_obs, (B, OBS_FEATURES), jnp.float32)

    probs = jax.block_until_ready(cartpole_reinforce_forward(obs, prepared))
    assert probs.shape == (B, NUM_ACTIONS)
    # Output is stored as bf16 (halved HBM write), so compare with bf16-level tolerance.
    ref = reference_forward_bf16(obs, params)
    assert jnp.allclose(probs, ref, atol=1e-2, rtol=1e-2), "mismatch vs bf16 reference"
    assert jnp.allclose(probs, reference_forward_f32(obs, params), atol=3e-2), \
        "mismatch vs f32 reference"
    assert jnp.allclose(jnp.sum(probs, axis=-1), 1.0, atol=1e-2), "probs not normalized"

    # Exercise the batch grid (>1 tile), as used for vectorized-env rollouts.
    B2 = 48
    obs2 = jax.random.normal(jax.random.PRNGKey(1), (B2, OBS_FEATURES), jnp.float32)
    probs2 = jax.block_until_ready(
        cartpole_reinforce_forward(obs2, prepared, tile_b=16))
    assert probs2.shape == (B2, NUM_ACTIONS)
    assert jnp.allclose(probs2, reference_forward_bf16(obs2, params),
                        atol=1e-2, rtol=1e-2), "mismatch vs reference (gridded)"
    assert jnp.allclose(jnp.sum(probs2, axis=-1), 1.0, atol=1e-2), \
        "probs not normalized (gridded)"

    print("KERNEL_OK")
</pallas_src>

<mosaic_0001>
module attributes {stable_mosaic.version = 11 : i64} {
  func.func @_policy_kernel(%arg0: i32, %arg1: memref<16x8xbf16, #tpu.memory_space<vmem>>, %arg2: memref<8x128xbf16, #tpu.memory_space<vmem>>, %arg3: memref<1x128xf32, #tpu.memory_space<vmem>>, %arg4: memref<128x64xbf16, #tpu.memory_space<vmem>>, %arg5: memref<1x64xf32, #tpu.memory_space<vmem>>, %arg6: memref<64x128xbf16, #tpu.memory_space<vmem>>, %arg7: memref<1x128xf32, #tpu.memory_space<vmem>>, %arg8: memref<16x128xbf16, #tpu.memory_space<vmem>>) attributes {dimension_semantics = [#tpu.dimension_semantics<parallel>], iteration_bounds = array<i64: 1>, scalar_prefetch = 0 : i64, scratch_operands = 0 : i64, tpu.core_type = #tpu.core_type<tc>, window_params = [{transform_indices = @transform_0, window_bounds = array<i64: 16, 8>}, {pipeline_mode = #tpu.pipeline_mode<synchronous>, transform_indices = @transform_1, window_bounds = array<i64: 8, 128>}, {pipeline_mode = #tpu.pipeline_mode<synchronous>, transform_indices = @transform_2, window_bounds = array<i64: 1, 128>}, {pipeline_mode = #tpu.pipeline_mode<synchronous>, transform_indices = @transform_3, window_bounds = array<i64: 128, 64>}, {pipeline_mode = #tpu.pipeline_mode<synchronous>, transform_indices = @transform_4, window_bounds = array<i64: 1, 64>}, {pipeline_mode = #tpu.pipeline_mode<synchronous>, transform_indices = @transform_5, window_bounds = array<i64: 64, 128>}, {pipeline_mode = #tpu.pipeline_mode<synchronous>, transform_indices = @transform_6, window_bounds = array<i64: 1, 128>}, {transform_indices = @transform_7, window_bounds = array<i64: 16, 128>}]} {
    %c0 = arith.constant 0 : index
    %c0_0 = arith.constant 0 : index
    %0 = vector.load %arg1[%c0, %c0_0] : memref<16x8xbf16, #tpu.memory_space<vmem>>, vector<16x8xbf16>
    %c0_1 = arith.constant 0 : index
    %c0_2 = arith.constant 0 : index
    %1 = vector.load %arg2[%c0_1, %c0_2] : memref<8x128xbf16, #tpu.memory_space<vmem>>, vector<8x128xbf16>
    %cst = arith.constant dense<0.000000e+00> : vector<16x128xf32>
    %2 = tpu.matmul %0, %1, %cst {dimension_numbers = #tpu.dot_dimension_numbers<[1], [0], [0], [1], [0, 0, 1, 1], [], []>} : vector<16x8xbf16>, vector<8x128xbf16>, vector<16x128xf32> -> vector<16x128xf32>
    %c0_3 = arith.constant 0 : index
    %c0_4 = arith.constant 0 : index
    %3 = vector.load %arg3[%c0_3, %c0_4] : memref<1x128xf32, #tpu.memory_space<vmem>>, vector<1x128xf32>
    %4 = vector.broadcast %3 : vector<1x128xf32> to vector<16x128xf32>
    %5 = arith.addf %2, %4 : vector<16x128xf32>
    %cst_5 = arith.constant 0.000000e+00 : f32
    %6 = vector.broadcast %cst_5 : f32 to vector<16x128xf32>
    %7 = arith.maximumf %5, %6 : vector<16x128xf32>
    %8 = arith.truncf %7 : vector<16x128xf32> to vector<16x128xbf16>
    %c0_6 = arith.constant 0 : index
    %c0_7 = arith.constant 0 : index
    %9 = vector.load %arg4[%c0_6, %c0_7] : memref<128x64xbf16, #tpu.memory_space<vmem>>, vector<128x64xbf16>
    %cst_8 = arith.constant dense<0.000000e+00> : vector<16x64xf32>
    %10 = tpu.matmul %8, %9, %cst_8 {dimension_numbers = #tpu.dot_dimension_numbers<[1], [0], [0], [1], [0, 0, 1, 1], [], []>} : vector<16x128xbf16>, vector<128x64xbf16>, vector<16x64xf32> -> vector<16x64xf32>
    %c0_9 = arith.constant 0 : index
    %c0_10 = arith.constant 0 : index
    %11 = vector.load %arg5[%c0_9, %c0_10] : memref<1x64xf32, #tpu.memory_space<vmem>>, vector<1x64xf32>
    %12 = vector.broadcast %11 : vector<1x64xf32> to vector<16x64xf32>
    %13 = arith.addf %10, %12 : vector<16x64xf32>
    %cst_11 = arith.constant 0.000000e+00 : f32
    %14 = vector.broadcast %cst_11 : f32 to vector<16x64xf32>
    %15 = arith.maximumf %13, %14 : vector<16x64xf32>
    %16 = arith.truncf %15 : vector<16x64xf32> to vector<16x64xbf16>
    %c0_12 = arith.constant 0 : index
    %c0_13 = arith.constant 0 : index
    %17 = vector.load %arg6[%c0_12, %c0_13] : memref<64x128xbf16, #tpu.memory_space<vmem>>, vector<64x128xbf16>
    %cst_14 = arith.constant dense<0.000000e+00> : vector<16x128xf32>
    %18 = tpu.matmul %16, %17, %cst_14 {dimension_numbers = #tpu.dot_dimension_numbers<[1], [0], [0], [1], [0, 0, 1, 1], [], []>} : vector<16x64xbf16>, vector<64x128xbf16>, vector<16x128xf32> -> vector<16x128xf32>
    %c0_15 = arith.constant 0 : index
    %c0_16 = arith.constant 0 : index
    %19 = vector.load %arg7[%c0_15, %c0_16] : memref<1x128xf32, #tpu.memory_space<vmem>>, vector<1x128xf32>
    %20 = vector.broadcast %19 : vector<1x128xf32> to vector<16x128xf32>
    %21 = arith.addf %18, %20 : vector<16x128xf32>
    %cst_17 = arith.constant dense<0xFF800000> : vector<16xf32>
    %22 = vector.multi_reduction <maximumf>, %21, %cst_17 [1] : vector<16x128xf32> to vector<16xf32>
    %23 = vector.shape_cast %22 : vector<16xf32> to vector<16x1xf32>
    %24 = vector.broadcast %23 : vector<16x1xf32> to vector<16x128xf32>
    %25 = arith.subf %21, %24 : vector<16x128xf32>
    %26 = math.exp %25 : vector<16x128xf32>
    %cst_18 = arith.constant dense<0.000000e+00> : vector<16xf32>
    %27 = vector.multi_reduction <add>, %26, %cst_18 [1] : vector<16x128xf32> to vector<16xf32>
    %28 = vector.shape_cast %27 : vector<16xf32> to vector<16x1xf32>
    %29 = vector.broadcast %28 : vector<16x1xf32> to vector<16x128xf32>
    %30 = arith.divf %26, %29 : vector<16x128xf32>
    %31 = arith.truncf %30 : vector<16x128xf32> to vector<16x128xbf16>
    %c0_19 = arith.constant 0 : index
    %c0_20 = arith.constant 0 : index
    %32 = vector.load %arg8[%c0_19, %c0_20] : memref<16x128xbf16, #tpu.memory_space<vmem>>, vector<16x128xbf16>
    tpu.vector_store %arg8[%c0_19, %c0_20], %31 {strides = array<i32>} : memref<16x128xbf16, #tpu.memory_space<vmem>>, vector<16x128xbf16>,
    return
  }
  func.func @transform_0(%arg0: i32) -> (i32, i32) {
    %c0_i32 = arith.constant 0 : i32
    %c0_i32_0 = arith.constant 0 : i32
    return %arg0, %c0_i32 : i32, i32
  }
  func.func @transform_1(%arg0: i32) -> (i32, i32) {
    %c0_i32 = arith.constant 0 : i32
    %c0_i32_0 = arith.constant 0 : i32
    %c0_i32_1 = arith.constant 0 : i32
    return %c0_i32, %c0_i32_0 : i32, i32
  }
  func.func @transform_2(%arg0: i32) -> (i32, i32) {
    %c0_i32 = arith.constant 0 : i32
    %c0_i32_0 = arith.constant 0 : i32
    %c0_i32_1 = arith.constant 0 : i32
    return %c0_i32, %c0_i32_0 : i32, i32
  }
  func.func @transform_3(%arg0: i32) -> (i32, i32) {
    %c0_i32 = arith.constant 0 : i32
    %c0_i32_0 = arith.constant 0 : i32
    %c0_i32_1 = arith.constant 0 : i32
    return %c0_i32, %c0_i32_0 : i32, i32
  }
  func.func @transform_4(%arg0: i32) -> (i32, i32) {
    %c0_i32 = arith.constant 0 : i32
    %c0_i32_0 = arith.constant 0 : i32
    %c0_i32_1 = arith.constant 0 : i32
    return %c0_i32, %c0_i32_0 : i32, i32
  }
  func.func @transform_5(%arg0: i32) -> (i32, i32) {
    %c0_i32 = arith.constant 0 : i32
    %c0_i32_0 = arith.constant 0 : i32
    %c0_i32_1 = arith.constant 0 : i32
    return %c0_i32, %c0_i32_0 : i32, i32
  }
  func.func @transform_6(%arg0: i32) -> (i32, i32) {
    %c0_i32 = arith.constant 0 : i32
    %c0_i32_0 = arith.constant 0 : i32
    %c0_i32_1 = arith.constant 0 : i32
    return %c0_i32, %c0_i32_0 : i32, i32
  }
  func.func @transform_7(%arg0: i32) -> (i32, i32) {
    %c0_i32 = arith.constant 0 : i32
    %c0_i32_0 = arith.constant 0 : i32
    return %arg0, %c0_i32 : i32, i32
  }
}

</mosaic_0001>

<llo_original>
// kernel: tpu_custom_call.1
$region0: #{tpu_custom_call.1}
  #allocation0 [shape = 'u32[]', space=smem, size = 0x4, offset = 0x4, fixed_abs, tag = 'smem constant byte address 0x4 - core index']
  #allocation1 [shape = 'u32[144,128]{1,0:T(1,128)}', space=vmem, size = 0x12000, scoped, tag = 'internal scratch']
  %s0 = inlined_call_operand.vmem [shape: bf16[16,8], index: 0, kind: input, shape index: {}]
  %s1 = inlined_call_operand.vmem [shape: bf16[8,128], index: 1, kind: input, shape index: {}]
  %s2 = inlined_call_operand.vmem [shape: f32[1,128], index: 2, kind: input, shape index: {}]
  %s3 = inlined_call_operand.vmem [shape: bf16[128,64], index: 3, kind: input, shape index: {}]
  %s4 = inlined_call_operand.vmem [shape: f32[1,64], index: 4, kind: input, shape index: {}]
  %s5 = inlined_call_operand.vmem [shape: bf16[64,128], index: 5, kind: input, shape index: {}]
  %s6 = inlined_call_operand.vmem [shape: f32[1,128], index: 6, kind: input, shape index: {}]
  %s7 = inlined_call_operand.hbm [shape: bf16[16,128], index: 7, kind: output, shape index: {}]
  %s8 = sld [smem:[#allocation0]]
  $region38: #{tpu_custom_call.1} parent=0
    _
  %s10 = ssub.s32 1, %s8
  %s11 = scalar_select 0, %s10, %s8
  $region1: #{tpu_custom_call.1} parent=0
    #allocation2 [shape = 'u8[4096]{0}', space=vmem, size = 0x1000, scoped, tag = 'output window, operand 0, single buffered']
    #allocation3 [shape = 's32[1]{0}', space=sflag, size = 0x4, scoped, tag = 'scoped memory for tpu_custom_call.1']
    %12 = vsyncpa [#allocation3], 0
    // Predicated region
    $region2: #{tpu_custom_call.1} parent=1 // pred_check
      _
    $region3: #{tpu_custom_call.1} parent=1 // pred_check_branch
      %14 = sbr.rel (0) target = $region5
    $region4: #{tpu_custom_call.1} parent=1 // pred_region
      _
    $region5: #{tpu_custom_call.1} parent=1 // pred_fallthru
      _
    // Predicated region
    $region6: #{tpu_custom_call.1} parent=1 // pred_check
      _
    $region7: #{tpu_custom_call.1} parent=1 // pred_check_branch
      %16 = sbr.rel (0) target = $region9
    $region8: #{tpu_custom_call.1} parent=1 // pred_region
      _
    $region9: #{tpu_custom_call.1} parent=1 // pred_fallthru
      _
    // Predicated region
    $region10: #{tpu_custom_call.1} parent=1 // pred_check
      _
    $region11: #{tpu_custom_call.1} parent=1 // pred_check_branch
      %18 = sbr.rel (0) target = $region13
    $region12: #{tpu_custom_call.1} parent=1 // pred_region
      _
    $region13: #{tpu_custom_call.1} parent=1 // pred_fallthru
      _
    // Predicated region
    $region14: #{tpu_custom_call.1} parent=1 // pred_check
      _
    $region15: #{tpu_custom_call.1} parent=1 // pred_check_branch
      %20 = sbr.rel (0) target = $region17
    $region16: #{tpu_custom_call.1} parent=1 // pred_region
      _
    $region17: #{tpu_custom_call.1} parent=1 // pred_fallthru
      _
    // Predicated region
    $region18: #{tpu_custom_call.1} parent=1 // pred_check
      _
    $region19: #{tpu_custom_call.1} parent=1 // pred_check_branch
      %22 = sbr.rel (0) target = $region21
    $region20: #{tpu_custom_call.1} parent=1 // pred_region
      _
    $region21: #{tpu_custom_call.1} parent=1 // pred_fallthru
      _
    // Predicated region
    $region22: #{tpu_custom_call.1} parent=1 // pred_check
      _
    $region23: #{tpu_custom_call.1} parent=1 // pred_check_branch
      %24 = sbr.rel (0) target = $region25
    $region24: #{tpu_custom_call.1} parent=1 // pred_region
      _
    $region25: #{tpu_custom_call.1} parent=1 // pred_fallthru
      _
    // Predicated region
    $region26: #{tpu_custom_call.1} parent=1 // pred_check
      _
    $region27: #{tpu_custom_call.1} parent=1 // pred_check_branch
      %26 = sbr.rel (0) target = $region29
    $region28: #{tpu_custom_call.1} parent=1 // pred_region
      _
    $region29: #{tpu_custom_call.1} parent=1 // pred_fallthru
      _
    %v28 = vld [vmem:[%s0] sm:$0xf]
    %v29 = vld [vmem:[%s0 + $0x4] sm:$0xf]
    %v30 = vld [vmem:[%s1] sm:$0xf]
    %v31 = vld [vmem:[%s2] sm:$0x1]
    %v33 = vlaneseq
    %v34 = vshrl.u32 %v33, 7
    %v35 = vsub.s32 0, %v34
    %v36 = vrot.slane %v31, %v35
    %v40 = vunpack.c.l.b16 %v28
    %v41 = vunpack.c.l.b16 %v29
    %v42 = vpack.c.b16 %v41, %v40
    %vm43 = vcmask 64512
    %v45 = vsel %vm43, %v42, 0
    %vm47 = vcmask 1043456
    %v49 = vsel %vm47, %v30, 0
    %51 = vmatprep.subr.bf16.mxu0 0
    %52 = vmatpush1.bf16.msra.mxu0 %v49
    %53 = vmatprep.subr.bf16.mxu0 0
    %54 = vmatpush1.bf16.msra.mxu0 0
    %55 = vmatprep.subr.bf16.mxu0 0
    %56 = vmatpush1.bf16.msra.mxu0 0
    %57 = vmatprep.subr.bf16.mxu0 0
    %58 = vmatpush1.bf16.msra.mxu0 0
    %59 = vmatprep.subr.bf16.mxu0 0
    %60 = vmatpush1.bf16.msra.mxu0 0
    %61 = vmatprep.subr.bf16.mxu0 0
    %62 = vmatpush1.bf16.msra.mxu0 0
    %63 = vmatprep.subr.bf16.mxu0 0
    %64 = vmatpush1.bf16.msra.mxu0 0
    %65 = vmatprep.subr.bf16.mxu0 0
    %66 = vmatpush1.bf16.msra.mxu0 0
    %67 = vmatprep.subr.bf16.mxu0 0
    %68 = vmatpush1.bf16.msra.mxu0 0
    %69 = vmatprep.subr.bf16.mxu0 0
    %70 = vmatpush1.bf16.msra.mxu0 0
    %71 = vmatprep.subr.bf16.mxu0 0
    %72 = vmatpush1.bf16.msra.mxu0 0
    %73 = vmatprep.subr.bf16.mxu0 0
    %74 = vmatpush1.bf16.msra.mxu0 0
    %75 = vmatprep.subr.bf16.mxu0 0
    %76 = vmatpush1.bf16.msra.mxu0 0
    %77 = vmatprep.subr.bf16.mxu0 0
    %78 = vmatpush1.bf16.msra.mxu0 0
    %79 = vmatprep.subr.bf16.mxu0 0
    %80 = vmatpush1.bf16.msra.mxu0 0
    %81 = vmatprep.subr.bf16.mxu0 0
    %82 = vmatpush1.bf16.msra.mxu0 0
    %83 = vmatprep.mubr.bf16.mxu0 0
    %84 = vmatmul.mubr.bf16.gmra.mrb[0].mxu0 %v45
    %v85 = vpop.f32.mrb[0].mxu0
    %v86 = vadd.f32 %v36, %v85
    %v87 = vpop.f32.mrb[0].mxu0
    %v88 = vpop.f32.mrb[0].mxu0
    %v89 = vadd.f32 %v36, %v88
    %v90 = vpop.f32.mrb[0].mxu0
    %91 = vdwg.mxu0
    %v92 = vmax.f32 %v86, 0.0
    %v93 = vmax.f32 %v89, 0.0
    %v94 = vpack.c.bf16 %v93, %v92
    %v95 = vld [vmem:[%s3] sm:$0xf]
    %v96 = vld [vmem:[%s3 + $0x4] sm:$0xf]
    %v97 = vld [vmem:[%s3 + $0x8] sm:$0xf]
    %v98 = vld [vmem:[%s3 + $0xc] sm:$0xf]
    %v99 = vld [vmem:[%s3 + $0x10] sm:$0xf]
    %v100 = vld [vmem:[%s3 + $0x14] sm:$0xf]
    %v101 = vld [vmem:[%s3 + $0x18] sm:$0xf]
    %v102 = vld [vmem:[%s3 + $0x1c] sm:$0xf]
    %v103 = vld [vmem:[%s3 + $0x20] sm:$0xf]
    %v104 = vld [vmem:[%s3 + $0x24] sm:$0xf]
    %v105 = vld [vmem:[%s3 + $0x28] sm:$0xf]
    %v106 = vld [vmem:[%s3 + $0x2c] sm:$0xf]
    %v107 = vld [vmem:[%s3 + $0x30] sm:$0xf]
    %v108 = vld [vmem:[%s3 + $0x34] sm:$0xf]
    %v109 = vld [vmem:[%s3 + $0x38] sm:$0xf]
    %v110 = vld [vmem:[%s3 + $0x3c] sm:$0xf]
    %v111 = vld [vmem:[%s4] sm:$0x1]
    %v113 = vlaneseq
    %v114 = vshrl.u32 %v113, 7
    %v115 = vsub.s32 0, %v114
    %v116 = vrot.slane %v111, %v115
    %v134 = vunpack.c.l.b16 %v95
    %v135 = vunpack.c.l.b16 %v96
    %v136 = vunpack.c.l.b16 %v97
    %v137 = vunpack.c.l.b16 %v98
    %v138 = vunpack.c.l.b16 %v99
    %v139 = vunpack.c.l.b16 %v100
    %v140 = vunpack.c.l.b16 %v101
    %v141 = vunpack.c.l.b16 %v102
    %v142 = vunpack.c.l.b16 %v103
    %v143 = vunpack.c.l.b16 %v104
    %v144 = vunpack.c.l.b16 %v105
    %v145 = vunpack.c.l.b16 %v106
    %v146 = vunpack.c.l.b16 %v107
    %v147 = vunpack.c.l.b16 %v108
    %v148 = vunpack.c.l.b16 %v109
    %v149 = vunpack.c.l.b16 %v110
    %v150 = vpack.c.b16 %v135, %v134
    %v151 = vpack.c.b16 %v137, %v136
    %v152 = vpack.c.b16 %v139, %v138
    %v153 = vpack.c.b16 %v141, %v140
    %v154 = vpack.c.b16 %v143, %v142
    %v155 = vpack.c.b16 %v145, %v144
    %v156 = vpack.c.b16 %v147, %v146
    %v157 = vpack.c.b16 %v149, %v148
    %166 = vmatprep.subr.bf16.mxu0 0
    %167 = vmatpush1.bf16.msra.mxu0 %v150
    %168 = vmatprep.subr.bf16.mxu0 0
    %169 = vmatpush1.bf16.msra.mxu0 %v151
    %170 = vmatprep.subr.bf16.mxu0 0
    %171 = vmatpush1.bf16.msra.mxu0 %v152
    %172 = vmatprep.subr.bf16.mxu0 0
    %173 = vmatpush1.bf16.msra.mxu0 %v153
    %174 = vmatprep.subr.bf16.mxu0 0
    %175 = vmatpush1.bf16.msra.mxu0 %v154
    %176 = vmatprep.subr.bf16.mxu0 0
    %177 = vmatpush1.bf16.msra.mxu0 %v155
    %178 = vmatprep.subr.bf16.mxu0 0
    %179 = vmatpush1.bf16.msra.mxu0 %v156
    %180 = vmatprep.subr.bf16.mxu0 0
    %181 = vmatpush1.bf16.msra.mxu0 %v157
    %182 = vmatprep.subr.bf16.mxu0 0
    %183 = vmatpush1.bf16.msra.mxu0 0
    %184 = vmatprep.subr.bf16.mxu0 0
    %185 = vmatpush1.bf16.msra.mxu0 0
    %186 = vmatprep.subr.bf16.mxu0 0
    %187 = vmatpush1.bf16.msra.mxu0 0
    %188 = vmatprep.subr.bf16.mxu0 0
    %189 = vmatpush1.bf16.msra.mxu0 0
    %190 = vmatprep.subr.bf16.mxu0 0
    %191 = vmatpush1.bf16.msra.mxu0 0
    %192 = vmatprep.subr.bf16.mxu0 0
    %193 = vmatpush1.bf16.msra.mxu0 0
    %194 = vmatprep.subr.bf16.mxu0 0
    %195 = vmatpush1.bf16.msra.mxu0 0
    %196 = vmatprep.subr.bf16.mxu0 0
    %197 = vmatpush1.bf16.msra.mxu0 0
    %198 = vmatprep.mubr.bf16.mxu0 0
    %199 = vmatmul.mubr.bf16.gmra.mrb[0].mxu0 %v94
    %v200 = vpop.f32.mrb[0].mxu0
    %v201 = vadd.f32 %v116, %v200
    %v202 = vpop.f32.mrb[0].mxu0
    %v203 = vpop.f32.mrb[0].mxu0
    %v204 = vadd.f32 %v116, %v203
    %v205 = vpop.f32.mrb[0].mxu0
    %206 = vdwg.mxu0
    %v207 = vmax.f32 %v201, 0.0
    %v208 = vmax.f32 %v204, 0.0
    %v209 = vpack.c.bf16 %v208, %v207
    %v210 = vld [vmem:[%s5] sm:$0xf]
    %v211 = vld [vmem:[%s5 + $0x4] sm:$0xf]
    %v212 = vld [vmem:[%s5 + $0x8] sm:$0xf]
    %v213 = vld [vmem:[%s5 + $0xc] sm:$0xf]
    %v214 = vld [vmem:[%s5 + $0x10] sm:$0xf]
    %v215 = vld [vmem:[%s5 + $0x14] sm:$0xf]
    %v216 = vld [vmem:[%s5 + $0x18] sm:$0xf]
    %v217 = vld [vmem:[%s5 + $0x1c] sm:$0xf]
    %v218 = vld [vmem:[%s6] sm:$0x1]
    %v220 = vlaneseq
    %v221 = vshrl.u32 %v220, 7
    %v222 = vsub.s32 0, %v221
    %v223 = vrot.slane %v218, %v222
    %v233 = vunpack.c.l.b16 %v210
    %v234 = vunpack.c.l.b16 %v211
    %v235 = vunpack.c.l.b16 %v212
    %v236 = vunpack.c.l.b16 %v213
    %v237 = vunpack.c.l.b16 %v214
    %v238 = vunpack.c.l.b16 %v215
    %v239 = vunpack.c.l.b16 %v216
    %v240 = vunpack.c.l.b16 %v217
    %v241 = vpack.c.b16 %v234, %v233
    %v242 = vpack.c.b16 %v236, %v235
    %v243 = vpack.c.b16 %v238, %v237
    %v244 = vpack.c.b16 %v240, %v239
    %vm249 = vcmask 523264
    %v251 = vsel %vm249, %v209, 0
    %253 = vmatprep.subr.bf16.mxu0 0
    %254 = vmatpush1.bf16.msra.mxu0 %v241
    %255 = vmatprep.subr.bf16.mxu0 0
    %256 = vmatpush1.bf16.msra.mxu0 %v242
    %257 = vmatprep.subr.bf16.mxu0 0
    %258 = vmatpush1.bf16.msra.mxu0 %v243
    %259 = vmatprep.subr.bf16.mxu0 0
    %260 = vmatpush1.bf16.msra.mxu0 %v244
    %261 = vmatprep.subr.bf16.mxu0 0
    %262 = vmatpush1.bf16.msra.mxu0 0
    %263 = vmatprep.subr.bf16.mxu0 0
    %264 = vmatpush1.bf16.msra.mxu0 0
    %265 = vmatprep.subr.bf16.mxu0 0
    %266 = vmatpush1.bf16.msra.mxu0 0
    %267 = vmatprep.subr.bf16.mxu0 0
    %268 = vmatpush1.bf16.msra.mxu0 0
    %269 = vmatprep.subr.bf16.mxu0 0
    %270 = vmatpush1.bf16.msra.mxu0 0
    %271 = vmatprep.subr.bf16.mxu0 0
    %272 = vmatpush1.bf16.msra.mxu0 0
    %273 = vmatprep.subr.bf16.mxu0 0
    %274 = vmatpush1.bf16.msra.mxu0 0
    %275 = vmatprep.subr.bf16.mxu0 0
    %276 = vmatpush1.bf16.msra.mxu0 0
    %277 = vmatprep.subr.bf16.mxu0 0
    %278 = vmatpush1.bf16.msra.mxu0 0
    %279 = vmatprep.subr.bf16.mxu0 0
    %280 = vmatpush1.bf16.msra.mxu0 0
    %281 = vmatprep.subr.bf16.mxu0 0
    %282 = vmatpush1.bf16.msra.mxu0 0
    %283 = vmatprep.subr.bf16.mxu0 0
    %284 = vmatpush1.bf16.msra.mxu0 0
    %285 = vmatprep.mubr.bf16.mxu0 0
    %286 = vmatmul.mubr.bf16.gmra.mrb[0].mxu0 %v251
    %v287 = vpop.f32.mrb[0].mxu0
    %v288 = vadd.f32 %v223, %v287
    %v289 = vpop.f32.mrb[0].mxu0
    %v290 = vpop.f32.mrb[0].mxu0
    %v291 = vadd.f32 %v223, %v290
    %v292 = vpop.f32.mrb[0].mxu0
    %293 = vdwg.mxu0
    %294 = vmax.xlane.f32.xlu0 %v288
    %v295 = vpop.xlane.xlu0 %294
    %296 = vmax.xlane.f32.xlu0 %v291
    %v297 = vpop.xlane.xlu0 %296
    %v298 = vsub.f32 %v288, %v295
    %v299 = vsub.f32 %v291, %v297
    %v300 = vmul.f32 %v298, 1.442695
    %v301 = vpow.pop %v300
    %v302 = vmul.f32 %v299, 1.442695
    %v303 = vpow.pop %v302
    %304 = vadd.xlane.f32.xlu0 %v301
    %v305 = vpop.xlane.xlu0 %304
    %306 = vadd.xlane.f32.xlu0 %v303
    %v307 = vpop.xlane.xlu0 %306
    %v308 = vrcp.pop %v305
    %v309 = vmul.f32 %v301, %v308
    %v310 = vrcp.pop %v307
    %v311 = vmul.f32 %v303, %v310
    %v312 = vpack.c.bf16 %v311, %v309
    %v314 = vunpack.c.l.b16 %v312
    %v315 = vunpack.c.h.b16 %v312
    %v316 = vpack.c.b16 %v314, %v314
    %v317 = vpack.c.b16 %v315, %v315
    %320 = vst [vmem:[#allocation2] sm:$0xf] %v316
    %321 = vst [vmem:[#allocation2 + $0x4] sm:$0xf] %v317
    // Predicated region
    $region30: #{tpu_custom_call.1} parent=1 // pred_check
      _
    $region31: #{tpu_custom_call.1} parent=1 // pred_check_branch
      %323 = sbr.rel (0) target = $region33
    $region32: #{tpu_custom_call.1} parent=1 // pred_region
      %s325 = ssub.s32 128, 128
      %326 = vsyncadd [#allocation3], %s325
      %s327 = sshll.u32 [#allocation2], 4
      %s328 = int_to_ptr.vmem [resolvable:$true] %s327
      %333 = dma.vmem_to_hbm [thread:$0]  %s328, 128, %s7, [#allocation3], 64, 64, 4
    $region33: #{tpu_custom_call.1} parent=1 // pred_fallthru
      _
    // Predicated region
    $region34: #{tpu_custom_call.1} parent=1 // pred_check
      _
    $region35: #{tpu_custom_call.1} parent=1 // pred_check_branch
      %335 = sbr.rel (0) target = $region37
    $region36: #{tpu_custom_call.1} parent=1 // pred_region
      %336 = dma.done [#allocation3], 128
    $region37: #{tpu_custom_call.1} parent=1 // pred_fallthru
      _
    %337 = vsyncpa [#allocation3], 1

</llo_original>
